<compile_context>
chip_gen: v6e
topology: v6e:2x2x1
jax: 0.10.0
libtpu: 0.0.40
codegen_flags: <defaults>
</compile_context>

<pallas_src>
import functools

import jax
import jax.numpy as jnp
from jax.experimental import pallas as pl
from jax.experimental.pallas import tpu as pltpu


def _cdiv(a: int, b: int) -> int:
    return -(-a // b)


def _round_up(a: int, b: int) -> int:
    return _cdiv(a, b) * b


def _sublane_multiple(dtype) -> int:
    itemsize = jnp.dtype(dtype).itemsize
    if itemsize >= 4:
        return 8
    if itemsize == 2:
        return 16
    return 32


# Primitives that are purely elementwise (safe to apply on a flattened,
# retiled layout).  Anything else -> plain-JAX fallback.
_ELEMENTWISE_PRIMS = frozenset({
    "add", "sub", "mul", "div", "rem", "pow", "integer_pow",
    "max", "min", "neg", "sign", "abs", "floor", "ceil", "round",
    "exp", "exp2", "expm1", "log", "log1p", "sqrt", "rsqrt", "cbrt",
    "logistic", "tanh", "sin", "cos", "tan", "asin", "acos", "atan", "atan2",
    "sinh", "cosh", "asinh", "acosh", "atanh", "erf", "erfc", "erf_inv",
    "square", "eq", "ne", "lt", "le", "gt", "ge", "select_n", "clamp",
    "and", "or", "xor", "not", "shift_left", "shift_right_logical",
    "shift_right_arithmetic", "population_count", "clz",
    "convert_element_type", "is_finite", "nextafter", "copy",
    "real", "imag", "conj",
})

# Call-like primitives whose sub-jaxprs we recurse into.
_CALL_PRIMS = frozenset({
    "pjit", "closed_call", "custom_jvp_call", "custom_vjp_call",
    "custom_vjp_call_jaxpr", "remat2", "checkpoint",
})


def _sub_jaxprs(eqn):
    for v in eqn.params.values():
        if hasattr(v, "jaxpr") and hasattr(getattr(v, "jaxpr"), "eqns"):
            yield v.jaxpr          # ClosedJaxpr
        elif hasattr(v, "eqns"):
            yield v                # Jaxpr


def _jaxpr_is_elementwise(jaxpr) -> bool:
    for eqn in jaxpr.eqns:
        name = eqn.primitive.name
        if name in _ELEMENTWISE_PRIMS:
            continue
        if name == "broadcast_in_dim":
            # Only scalar / all-ones broadcasts (e.g. `x * 2.0`) are allowed.
            if all(d == 1 for d in eqn.invars[0].aval.shape):
                continue
            return False
        if name in _CALL_PRIMS:
            subs = list(_sub_jaxprs(eqn))
            if subs and all(_jaxpr_is_elementwise(s) for s in subs):
                continue
        return False
    return True


@functools.lru_cache(maxsize=1)
def _tpu_tuning():
    """Returns (target_tile_bytes_per_buffer, vmem_limit_cap_bytes)."""
    try:
        kind = jax.devices()[0].device_kind.lower()
    except Exception:
        kind = ""
    if "v5e" in kind or "v5 lite" in kind or "v5lite" in kind:
        return 2 << 20, 96 << 20     # ~0.8 TB/s HBM: 2 MiB tiles already fine
    if "v6" in kind:
        return 6 << 20, 96 << 20     # 128 MiB VMEM: big tiles, generous cap
    return 6 << 20, 40 << 20         # v7x / unknown: only 64 MiB VMEM per TC


class PallasLambdaModule:
    """Pallas equivalent of torch LambdaModule: forward(x) = lambd(x)."""

    LANE = 512  # lane-dense last dim (multiple of 128) -> unmasked vst

    def __init__(self, lambd, small_input_bytes: int = 256 << 10):
        self.lambd = lambd
        self.small_input_bytes = small_input_bytes

    def __call__(self, x):
        lambd = self.lambd
        orig_shape = x.shape
        n = int(x.size)

        if n == 0:
            return lambd(x)

        in_dtype = x.dtype
        in_itemsize = jnp.dtype(in_dtype).itemsize

        # Small inputs: wrapper plumbing + per-step overhead exceed HBM time;
        # XLA's fused elementwise is strictly faster.
        if n * in_itemsize <= self.small_input_bytes:
            return lambd(x)

        # Trace once: output shape/dtype and an elementwise-only jaxpr check
        # (shape equality alone would let flip/softmax/cumsum through and
        # silently produce wrong results under the flattened tiling).
        try:
            in_spec = jax.ShapeDtypeStruct(x.shape, in_dtype)
            out_aval = jax.eval_shape(lambd, in_spec)
            closed = jax.make_jaxpr(lambd)(in_spec)
            elementwise = _jaxpr_is_elementwise(closed.jaxpr)
            # Captured non-scalar constants break the flattened layout too.
            for cv in closed.jaxpr.constvars:
                if any(d != 1 for d in cv.aval.shape):
                    elementwise = False
        except Exception:
            return lambd(x)

        if (not isinstance(out_aval, jax.ShapeDtypeStruct)
                or out_aval.shape != x.shape
                or not elementwise):
            # TODO(synk): non-elementwise / non-shape-preserving lambdas need a
            # per-lambda grid & BlockSpec; fall back to plain JAX.
            return lambd(x)

        out_dtype = out_aval.dtype
        out_itemsize = jnp.dtype(out_dtype).itemsize
        max_itemsize = max(in_itemsize, out_itemsize)
        sublane = max(_sublane_multiple(in_dtype), _sublane_multiple(out_dtype))
        lane = self.LANE

        target_tile_bytes, vmem_cap = _tpu_tuning()

        rows = _cdiv(n, lane)
        padded = rows * lane != n

        # Tile rows: ~target_tile_bytes per buffer, sublane-aligned.  For
        # non-trivial tensors force >= 2 grid steps so "parallel" shards the
        # work across v7x's two TensorCores (no-op on single-TC v5e/v6e).
        target_tr = max(sublane,
                        (target_tile_bytes // (lane * max_itemsize))
                        // sublane * sublane)
        tr = target_tr
        if n * max_itemsize > (1 << 20):
            tr = min(tr, _round_up(_cdiv(rows, 2), sublane))
        tr = max(sublane, min(tr, _round_up(rows, sublane)))
        grid = (_cdiv(rows, tr),)

        # Aligned path: reshapes are pure bitcasts, no pad, no slice.
        # Misaligned path: edge-pad at most LANE-1 elements (edge values keep
        # log/rsqrt-style lambdas NaN-free in the pad region), slice after.
        flat = x.reshape(-1)
        if padded:
            flat = jnp.pad(flat, (0, rows * lane - n), mode="edge")
        x2d = flat.reshape(rows, lane)

        def kernel(x_ref, o_ref):
            # Elementwise hot path on a VMEM-resident lane-dense tile.
            o_ref[...] = lambd(x_ref[...]).astype(o_ref.dtype)

        # VMEM budget: input + output tiles, each double-buffered, + headroom.
        tile_in_bytes = tr * lane * in_itemsize
        tile_out_bytes = tr * lane * out_itemsize
        vmem_need = 2 * (tile_in_bytes + tile_out_bytes)
        vmem_limit = int(min(max(vmem_need + (4 << 20), 16 << 20), vmem_cap))

        try:
            cost = pl.estimate_cost(
                lambd, jax.ShapeDtypeStruct((rows, lane), in_dtype))
        except Exception:
            cost = pl.CostEstimate(
                flops=n, transcendentals=0,
                bytes_accessed=n * (in_itemsize + out_itemsize))

        out2d = pl.pallas_call(
            kernel,
            out_shape=jax.ShapeDtypeStruct((rows, lane), out_dtype),
            grid_spec=pltpu.PrefetchScalarGridSpec(
                num_scalar_prefetch=0,
                grid=grid,
                in_specs=[pl.BlockSpec((tr, lane), lambda i: (i, 0))],
                out_specs=pl.BlockSpec((tr, lane), lambda i: (i, 0)),
            ),
            compiler_params=pltpu.CompilerParams(
                dimension_semantics=("parallel",),
                vmem_limit_bytes=vmem_limit,
            ),
            cost_estimate=cost,
        )(x2d)

        if padded:
            return out2d.reshape(-1)[:n].reshape(orig_shape)
        return out2d.reshape(orig_shape)


if __name__ == "__main__":
    key = jax.random.PRNGKey(0)
    k1, k2 = jax.random.split(key)

    # Concrete deterministic elementwise lambda.
    lambd = lambda t: jnp.maximum(t, 0.0) * 2.0 + 1.0

    # small_input_bytes=0 forces the Pallas path even at demo sizes so the
    # kernel itself is exercised.
    module = PallasLambdaModule(lambd, small_input_bytes=0)

    # Lane-aligned case (2*4*16*16 = 2048 = 4 * 512): no pad, bitcast reshapes.
    x = jax.random.normal(k1, (2, 4, 16, 16), dtype=jnp.float32)
    out = jax.block_until_ready(module(x))
    ref = lambd(x)
    assert out.shape == ref.shape and out.dtype == ref.dtype
    assert jnp.allclose(out, ref, atol=1e-6), "mismatch (aligned path)"

    # Lane-misaligned case exercises the <= LANE-1 element edge-pad path.
    x_mis = jax.random.normal(k2, (2, 4, 16, 15), dtype=jnp.float32)
    out_mis = jax.block_until_ready(module(x_mis))
    assert jnp.allclose(out_mis, lambd(x_mis), atol=1e-6), "mismatch (pad path)"

    # Non-elementwise, shape-preserving lambda must fall back to plain JAX
    # (the old shape-only check would have produced wrong results here).
    flip_mod = PallasLambdaModule(lambda t: jnp.flip(t, axis=-1),
                                  small_input_bytes=0)
    out_flip = jax.block_until_ready(flip_mod(x))
    assert jnp.allclose(out_flip, jnp.flip(x, axis=-1)), "fallback mismatch"

    # Default small-input fast path (plain JAX) stays correct too.
    out_fast = jax.block_until_ready(PallasLambdaModule(lambd)(x))
    assert jnp.allclose(out_fast, ref, atol=1e-6), "fast path mismatch"

    print("KERNEL_OK")
</pallas_src>

<mosaic_0001>
module attributes {stable_mosaic.version = 11 : i64} {
  func.func @kernel(%arg0: i32, %arg1: memref<8x512xf32, #tpu.memory_space<vmem>>, %arg2: memref<8x512xf32, #tpu.memory_space<vmem>>) attributes {dimension_semantics = [#tpu.dimension_semantics<parallel>], iteration_bounds = array<i64: 1>, scalar_prefetch = 0 : i64, scratch_operands = 0 : i64, tpu.core_type = #tpu.core_type<tc>, window_params = [{transform_indices = @transform_0, window_bounds = array<i64: 8, 512>}, {transform_indices = @transform_1, window_bounds = array<i64: 8, 512>}]} {
    %c0 = arith.constant 0 : index
    %c0_0 = arith.constant 0 : index
    %0 = vector.load %arg1[%c0, %c0_0] : memref<8x512xf32, #tpu.memory_space<vmem>>, vector<8x512xf32>
    %cst = arith.constant 0.000000e+00 : f32
    %1 = vector.broadcast %cst : f32 to vector<8x512xf32>
    %2 = arith.maximumf %0, %1 : vector<8x512xf32>
    %cst_1 = arith.constant 2.000000e+00 : f32
    %3 = vector.broadcast %cst_1 : f32 to vector<8x512xf32>
    %4 = arith.mulf %2, %3 : vector<8x512xf32>
    %cst_2 = arith.constant 1.000000e+00 : f32
    %5 = vector.broadcast %cst_2 : f32 to vector<8x512xf32>
    %6 = arith.addf %4, %5 : vector<8x512xf32>
    %c0_3 = arith.constant 0 : index
    %c0_4 = arith.constant 0 : index
    %7 = vector.load %arg2[%c0_3, %c0_4] : memref<8x512xf32, #tpu.memory_space<vmem>>, vector<8x512xf32>
    tpu.vector_store %arg2[%c0_3, %c0_4], %6 {strides = array<i32>} : memref<8x512xf32, #tpu.memory_space<vmem>>, vector<8x512xf32>,
    return
  }
  func.func @transform_0(%arg0: i32) -> (i32, i32) {
    %c0_i32 = arith.constant 0 : i32
    %c0_i32_0 = arith.constant 0 : i32
    return %arg0, %c0_i32 : i32, i32
  }
  func.func @transform_1(%arg0: i32) -> (i32, i32) {
    %c0_i32 = arith.constant 0 : i32
    %c0_i32_0 = arith.constant 0 : i32
    return %arg0, %c0_i32 : i32, i32
  }
}

</mosaic_0001>

<llo_original>
// kernel: tpu_custom_call.1
$region0: #{tpu_custom_call.1}
  #allocation0 [shape = 'u32[]', space=smem, size = 0x4, offset = 0x4, fixed_abs, tag = 'smem constant byte address 0x4 - core index']
  #allocation1 [shape = 'u32[144,128]{1,0:T(1,128)}', space=vmem, size = 0x12000, scoped, tag = 'internal scratch']
  %s0 = inlined_call_operand.hbm [shape: f32[4,512], index: 0, kind: input, shape index: {}]
  %s1 = inlined_call_operand.hbm [shape: f32[4,512], index: 1, kind: output, shape index: {}]
  %s2 = sld [smem:[#allocation0]]
  $region18: #{tpu_custom_call.1} parent=0
    _
  %s4 = ssub.s32 1, %s2
  %s5 = scalar_select 0, %s4, %s2
  $region1: #{tpu_custom_call.1} parent=0
    #allocation2 [shape = 'u8[16384]{0}', space=vmem, size = 0x4000, scoped, tag = 'input window, operand 0, single buffered']
    #allocation3 [shape = 's32[1]{0}', space=sflag, size = 0x4, scoped, tag = 'scoped memory for tpu_custom_call.1']
    #allocation4 [shape = 's32[1]{0}', space=sflag, size = 0x4, scoped, tag = 'scoped memory for tpu_custom_call.1']
    #allocation5 [shape = 'u8[16384]{0}', space=vmem, size = 0x4000, scoped, tag = 'output window, operand 0, single buffered']
    %6 = vsyncpa [#allocation3], 0
    %7 = vsyncpa [#allocation4], 0
    // Predicated region
    $region2: #{tpu_custom_call.1} parent=1 // pred_check
      _
    $region3: #{tpu_custom_call.1} parent=1 // pred_check_branch
      %9 = sbr.rel (0) target = $region5
    $region4: #{tpu_custom_call.1} parent=1 // pred_region
      %s11 = ssub.s32 512, 256
      %12 = vsyncadd [#allocation3], %s11
      %s13 = sshll.u32 [#allocation2], 4
      %s14 = int_to_ptr.vmem [resolvable:$true] %s13
      %19 = dma.hbm_to_vmem [thread:$0]  %s0, 256, %s14, [#allocation3], 256, 256, 16
    $region5: #{tpu_custom_call.1} parent=1 // pred_fallthru
      _
    // Predicated region
    $region6: #{tpu_custom_call.1} parent=1 // pred_check
      _
    $region7: #{tpu_custom_call.1} parent=1 // pred_check_branch
      %21 = sbr.rel (0) target = $region9
    $region8: #{tpu_custom_call.1} parent=1 // pred_region
      %22 = dma.done [#allocation3], 512
    $region9: #{tpu_custom_call.1} parent=1 // pred_fallthru
      _
    %v23 = vld [vmem:[#allocation2] sm:$0xff]
    %v24 = vld [vmem:[#allocation2 + $0x8] sm:$0xff]
    %v25 = vld [vmem:[#allocation2 + $0x10] sm:$0xff]
    %v26 = vld [vmem:[#allocation2 + $0x18] sm:$0xff]
    %v27 = vmax.f32 %v23, 0.0
    %v28 = vmax.f32 %v24, 0.0
    %v29 = vmax.f32 %v25, 0.0
    %v30 = vmax.f32 %v26, 0.0
    %v31 = vmul.f32 %v27, 2.0
    %v32 = vmul.f32 %v28, 2.0
    %v33 = vmul.f32 %v29, 2.0
    %v34 = vmul.f32 %v30, 2.0
    %v35 = vadd.f32 %v31, 1.0
    %v36 = vadd.f32 %v32, 1.0
    %v37 = vadd.f32 %v33, 1.0
    %v38 = vadd.f32 %v34, 1.0
    %39 = vst [vmem:[#allocation5] sm:$0xff] %v35
    %40 = vst [vmem:[#allocation5 + $0x8] sm:$0xff] %v36
    %41 = vst [vmem:[#allocation5 + $0x10] sm:$0xff] %v37
    %42 = vst [vmem:[#allocation5 + $0x18] sm:$0xff] %v38
    // Predicated region
    $region10: #{tpu_custom_call.1} parent=1 // pred_check
      _
    $region11: #{tpu_custom_call.1} parent=1 // pred_check_branch
      %44 = sbr.rel (0) target = $region13
    $region12: #{tpu_custom_call.1} parent=1 // pred_region
      %s46 = ssub.s32 512, 256
      %47 = vsyncadd [#allocation4], %s46
      %s48 = sshll.u32 [#allocation5], 4
      %s49 = int_to_ptr.vmem [resolvable:$true] %s48
      %54 = dma.vmem_to_hbm [thread:$0]  %s49, 256, %s1, [#allocation4], 256, 256, 16
    $region13: #{tpu_custom_call.1} parent=1 // pred_fallthru
      _
    // Predicated region
    $region14: #{tpu_custom_call.1} parent=1 // pred_check
      _
    $region15: #{tpu_custom_call.1} parent=1 // pred_check_branch
      %56 = sbr.rel (0) target = $region17
    $region16: #{tpu_custom_call.1} parent=1 // pred_region
      %57 = dma.done [#allocation4], 512
    $region17: #{tpu_custom_call.1} parent=1 // pred_fallthru
      _
    %58 = vsyncpa [#allocation3], 1
    %59 = vsyncpa [#allocation4], 1

</llo_original>
